<compile_context>
chip_gen: v6e
topology: v6e:2x2x1
jax: 0.10.0
libtpu: 0.0.40
codegen_flags: <defaults>
</compile_context>

<pallas_src>
import functools
import math

import numpy as np
import jax
import jax.numpy as jnp
from jax import lax
from jax.experimental import pallas as pl
from jax.experimental.pallas import tpu as pltpu


_GP_TARGET = 256  # packed gram width ~ one MXU tile on v6e/v7x (2x128 on v5e)


def _round_up(x, m):
    return ((x + m - 1) // m) * m


# ---------------------------------------------------------------------------
# Kernel
# ---------------------------------------------------------------------------
def _instance_loss_px_kernel(zpx_ref, bias_ref, tsel_ref, out_ref, *,
                             inv_temperature, n_valid_rows, n_groups,
                             group_rows, total_groups, scale_operand, aligned):
    """One grid step = `n_groups` packed grams of `group_rows` pixel rows.

    zpx_ref  : (n_groups * GP, D)  flattened pixel features for this chunk
    bias_ref : (GP, GP)  additive mask: 0 on same-sample off-diagonal entries,
                         -inf on the diagonal and on cross-sample blocks
    tsel_ref : (GP, GP)  1.0 at the CE label-0 (first off-diagonal) column of
                         each row, 0 elsewhere
    out_ref  : (1, 8, 128)  per-chunk partial loss (broadcast over the tile)
    """
    GP = group_rows
    chunk_rows = n_groups * GP
    row_base = pl.program_id(0) * chunk_rows

    # Groups in this chunk that still contain at least one valid sample — the
    # ragged tail chunk skips fully out-of-range groups entirely.
    groups_here = jnp.minimum(
        jnp.int32(n_groups),
        jnp.int32(total_groups) - pl.program_id(0) * n_groups)

    def group_body(g, acc):
        start = g * GP
        if aligned:
            start = pl.multiple_of(start, 8)
        zg = zpx_ref[pl.ds(start, GP), :]                         # (GP, D)

        # Zero rows that fall past the real array (the ragged last chunk is
        # read out-of-bounds instead of host-padded), so stale-VMEM garbage
        # can never pollute valid rows of the packed gram with NaN/Inf.
        row_id = (row_base + g * GP
                  + lax.broadcasted_iota(jnp.int32, (GP, 1), 0))
        valid = row_id < n_valid_rows                             # (GP, 1)
        zg = jnp.where(valid, zg, jnp.zeros_like(zg))

        # Packed gram on the MXU, f32 accumulation; 1/temperature folded into
        # one operand when that is the cheaper side (GP >= D).
        if scale_operand:
            sim = jnp.einsum("pd,qd->pq", zg * inv_temperature, zg,
                             preferred_element_type=jnp.float32)
        else:
            sim = jnp.einsum("pd,qd->pq", zg, zg,
                             preferred_element_type=jnp.float32)
            sim = sim * inv_temperature                           # (GP, GP)

        # Numerically stable logsumexp over the same-sample off-diagonal
        # logits (the resident bias holds 0 there and -inf elsewhere).
        masked = sim + bias_ref[...]
        m = jnp.max(masked, axis=-1, keepdims=True)               # (GP, 1)
        p = jnp.exp(masked - m)
        lse = m + jnp.log(jnp.sum(p, axis=-1, keepdims=True))     # (GP, 1)

        # CrossEntropy label 0 == first same-sample off-diagonal logit.
        tgt = jnp.sum(sim * tsel_ref[...], axis=-1, keepdims=True)

        per_row = jnp.where(valid, lse - tgt, 0.0)                # (GP, 1)
        return acc + jnp.sum(per_row, keepdims=True)

    total = lax.fori_loop(0, groups_here, group_body,
                          jnp.zeros((1, 1), jnp.float32))
    out_ref[...] = jnp.broadcast_to(total, out_ref.shape)


# ---------------------------------------------------------------------------
# Host-side layout / mask construction
# ---------------------------------------------------------------------------
def _build_mask_tables(group, n_px):
    """Resident (GP, GP) additive mask and label-0 selection matrix."""
    GP = group * n_px
    bias = np.full((GP, GP), -np.inf, np.float32)
    tsel = np.zeros((GP, GP), np.float32)
    for s in range(group):
        lo, hi = s * n_px, (s + 1) * n_px
        blk = np.zeros((n_px, n_px), np.float32)
        np.fill_diagonal(blk, -np.inf)
        bias[lo:hi, lo:hi] = blk                 # same-sample off-diag -> 0
        tsel[lo, lo + 1] = 1.0                   # sample row 0 -> column 1
        tsel[lo + 1:hi, lo] = 1.0                # sample rows j>0 -> column 0
    return bias, tsel


def _pick_layout(n_samples, n_px, dim, itemsize, budget_bytes):
    """Choose (G, GP, groups_per_step, n_chunks, total_groups)."""
    P = n_px

    # Packing factor G: pack G samples into one (G*P, G*P) gram to fill the
    # MXU; prefer G*P % 8 == 0 so in-kernel row slices stay sublane-aligned.
    G = max(1, min(_GP_TARGET // P, n_samples))
    while G > 1 and (G * P) % 8 != 0:
        G -= 1
    GP = G * P
    total_groups = -(-n_samples // G)

    # VMEM budget with padded shapes: temporaries are per-group (the kernel
    # loops over groups), only the input row-block scales with groups/step.
    d_pad = _round_up(dim, 128)
    gp_sub = _round_up(GP, 8)
    gp_lane = _round_up(GP, 128)
    resident = 2 * gp_sub * gp_lane * 4                 # bias + label-selection
    live = 6 * gp_sub * max(gp_lane, d_pad) * 4         # one group's f32 temps
    per_group_in = 2 * GP * d_pad * itemsize            # double-buffered input
    ng = max(1, (budget_bytes - resident - live) // max(per_group_in, 1))
    ng = int(min(ng, total_groups))

    n_chunks = -(-total_groups // ng)
    if n_chunks == 1 and total_groups >= 2:
        # v7x megacore: give both TensorCores at least one "parallel" step.
        ng = -(-total_groups // 2)
        n_chunks = -(-total_groups // ng)

    # Input row-block constraint: (ng * GP) % 8 == 0, or one block spanning
    # the whole (tiny) array.
    q = 8 // math.gcd(GP, 8)
    if q > 1:
        if total_groups >= q:
            ng = max(q, (ng // q) * q)
            n_chunks = -(-total_groups // ng)
        else:
            ng, n_chunks = total_groups, 1               # full-array block
    return G, GP, ng, n_chunks, total_groups


# ---------------------------------------------------------------------------
# Public wrapper
# ---------------------------------------------------------------------------
def instance_loss_px(z, z_px, asso_mat=None, temperature=0.5):
    """JAX/Pallas equivalent of InstanceLossPX.forward (3-D z_px branch).

    z and asso_mat are accepted for signature parity with the PyTorch module
    but are unused in this branch (the module overwrites `z` in its loop).
    """
    del z, asso_mat
    n_samples, n_px, dim = z_px.shape
    if n_px < 2:
        raise ValueError("InstanceLossPX needs >= 2 pixels per super-pixel")

    try:
        vmem_cap = int(pltpu.get_tpu_info().vmem_capacity_bytes)
    except Exception:
        vmem_cap = 64 << 20                      # v7x has the smallest VMEM
    vmem_limit = int(min((vmem_cap * 3) // 4, 100 << 20))
    budget = vmem_limit // 2                     # pipelining/compiler headroom

    G, GP, NG, n_chunks, total_groups = _pick_layout(
        n_samples, n_px, dim, z_px.dtype.itemsize, budget)
    chunk_rows = NG * GP
    n_rows = n_samples * n_px

    bias, tsel = _build_mask_tables(G, n_px)
    # Free reshape to (n_samples * n_px, dim): lets G samples be packed into
    # one gram without any host-side zero-pad copy of z_px.
    z_flat = z_px.reshape(n_rows, dim)

    kernel = functools.partial(
        _instance_loss_px_kernel,
        inv_temperature=1.0 / float(temperature),
        n_valid_rows=n_rows,
        n_groups=NG,
        group_rows=GP,
        total_groups=total_groups,
        scale_operand=(GP >= dim),
        aligned=(GP % 8 == 0),
    )

    partials = pl.pallas_call(
        kernel,
        out_shape=jax.ShapeDtypeStruct((n_chunks, 8, 128), jnp.float32),
        grid_spec=pltpu.PrefetchScalarGridSpec(
            num_scalar_prefetch=0,
            grid=(n_chunks,),
            in_specs=[
                pl.BlockSpec((chunk_rows, dim), lambda i: (i, 0)),
                pl.BlockSpec((GP, GP), lambda i: (0, 0)),   # resident mask
                pl.BlockSpec((GP, GP), lambda i: (0, 0)),   # resident labels
            ],
            out_specs=pl.BlockSpec((1, 8, 128), lambda i: (i, 0, 0)),
        ),
        compiler_params=pltpu.CompilerParams(
            dimension_semantics=("parallel",),
            vmem_limit_bytes=vmem_limit),
    )(z_flat, jnp.asarray(bias), jnp.asarray(tsel))

    return jnp.sum(partials[:, 0, 0]) / jnp.float32(n_samples)


# ---------------------------------------------------------------------------
# Reference + demo
# ---------------------------------------------------------------------------
def _reference_numpy(z_px, temperature=0.5):
    """Pure NumPy replica of the PyTorch try-branch for verification."""
    z_px = np.asarray(z_px, np.float32)
    n, P, _ = z_px.shape
    total = 0.0
    for i in range(n):
        zi = z_px[i]
        sim = zi @ zi.T / temperature
        mask = ~np.eye(P, dtype=bool)
        pos = sim[mask].reshape(P, P - 1)
        mx = pos.max(axis=1, keepdims=True)
        lse = mx[:, 0] + np.log(np.exp(pos - mx).sum(axis=1))
        total += float(np.sum(lse - pos[:, 0]))
    return total / n


if __name__ == "__main__":
    key = jax.random.PRNGKey(0)
    k1, k2, k3, k4 = jax.random.split(key, 4)

    # Shapes implied by the module: z_px is (n_samples, n_px_per_sp, dim_fea).
    n_samples, n_px_per_sp, dim_fea = 2, 8, 32
    n_sps, n_pxs = 4, 16

    z_px = jax.random.normal(k1, (n_samples, n_px_per_sp, dim_fea), jnp.float32)
    z = jax.random.normal(k2, (n_sps, dim_fea), jnp.float32)       # unused here
    asso_mat = (jax.random.uniform(k3, (n_pxs, n_sps)) > 0.5).astype(jnp.float32)

    loss = jax.block_until_ready(
        instance_loss_px(z, z_px, asso_mat, temperature=0.5))
    np.testing.assert_allclose(np.asarray(loss),
                               _reference_numpy(z_px, temperature=0.5),
                               rtol=1e-4, atol=1e-4)

    # Slightly larger checks: multi-chunk grid, G>1 sample packing per gram,
    # and the ragged / out-of-bounds tail path (no host padding).
    for ns in (37, 128):
        zp = jax.random.normal(k4, (ns, n_px_per_sp, dim_fea), jnp.float32)
        got = jax.block_until_ready(
            instance_loss_px(None, zp, None, temperature=0.5))
        np.testing.assert_allclose(np.asarray(got),
                                   _reference_numpy(zp, temperature=0.5),
                                   rtol=5e-4, atol=5e-4)

    print("KERNEL_OK")
</pallas_src>

<mosaic_0001>
module attributes {stable_mosaic.version = 11 : i64} {
  func.func @_instance_loss_px_kernel(%arg0: i32, %arg1: memref<16x32xf32, #tpu.memory_space<vmem>>, %arg2: memref<16x16xf32, #tpu.memory_space<vmem>>, %arg3: memref<16x16xf32, #tpu.memory_space<vmem>>, %arg4: memref<1x8x128xf32, #tpu.memory_space<vmem>>) attributes {dimension_semantics = [#tpu.dimension_semantics<parallel>], iteration_bounds = array<i64: 1>, scalar_prefetch = 0 : i64, scratch_operands = 0 : i64, tpu.core_type = #tpu.core_type<tc>, window_params = [{transform_indices = @transform_0, window_bounds = array<i64: 16, 32>}, {pipeline_mode = #tpu.pipeline_mode<synchronous>, transform_indices = @transform_1, window_bounds = array<i64: 16, 16>}, {pipeline_mode = #tpu.pipeline_mode<synchronous>, transform_indices = @transform_2, window_bounds = array<i64: 16, 16>}, {transform_indices = @transform_3, window_bounds = array<i64: 1, 8, 128>}]} {
    %c16_i32 = arith.constant 16 : i32
    %0 = arith.muli %arg0, %c16_i32 : i32
    %c1_i32 = arith.constant 1 : i32
    %1 = arith.muli %arg0, %c1_i32 : i32
    %c1_i32_0 = arith.constant 1 : i32
    %2 = arith.subi %c1_i32_0, %1 : i32
    %c1_i32_1 = arith.constant 1 : i32
    %3 = arith.minsi %c1_i32_1, %2 : i32
    %cst = arith.constant 0.000000e+00 : f32
    %4 = vector.broadcast %cst : f32 to vector<1x1xf32>
    %c0_i32 = arith.constant 0 : i32
    %5 = arith.subi %3, %c0_i32 : i32
    %6 = arith.addi %c0_i32, %5 : i32
    %c1_i32_2 = arith.constant 1 : i32
    %7 = scf.for %arg5 = %c0_i32 to %6 step %c1_i32_2 iter_args(%arg6 = %4) -> (vector<1x1xf32>)  : i32 {
      %c16_i32_5 = arith.constant 16 : i32
      %11 = arith.muli %arg5, %c16_i32_5 : i32
      %12 = tpu.assume_multiple %11, 8 : i32
      %13 = arith.index_cast %12 : i32 to index
      %c0_6 = arith.constant 0 : index
      %14 = vector.load %arg1[%13, %c0_6] : memref<16x32xf32, #tpu.memory_space<vmem>>, vector<16x32xf32>
      %c16_i32_7 = arith.constant 16 : i32
      %15 = arith.muli %arg5, %c16_i32_7 : i32
      %16 = arith.addi %0, %15 : i32
      %17 = tpu.iota {dimensions = array<i32: 0>} : vector<16x1xi32>
      %18 = vector.broadcast %16 : i32 to vector<16x1xi32>
      %19 = arith.addi %18, %17 : vector<16x1xi32>
      %c16_i32_8 = arith.constant 16 : i32
      %20 = vector.broadcast %c16_i32_8 : i32 to vector<16x1xi32>
      %21 = arith.cmpi slt, %19, %20 : vector<16x1xi32>
      %cst_9 = arith.constant 0.000000e+00 : f32
      %22 = vector.broadcast %cst_9 : f32 to vector<16x32xf32>
      %23 = vector.shape_cast %21 : vector<16x1xi1> to vector<16x1xi1>
      %24 = vector.broadcast %23 : vector<16x1xi1> to vector<16x32xi1>
      %25 = arith.select %24, %14, %22 : vector<16x32xi1>, vector<16x32xf32>
      "tpu.trace_start"() <{level = 10 : i32, message = "pd,qd->pq"}> : () -> ()
      %cst_10 = arith.constant dense<0.000000e+00> : vector<16x16xf32>
      %26 = tpu.matmul %25, %25, %cst_10 {dimension_numbers = #tpu.dot_dimension_numbers<[1], [1], [0], [0], [0, 0, 1, 0], [], []>} : vector<16x32xf32>, vector<16x32xf32>, vector<16x16xf32> -> vector<16x16xf32>
      "tpu.trace_stop"() : () -> ()
      %cst_11 = arith.constant 2.000000e+00 : f32
      %27 = vector.broadcast %cst_11 : f32 to vector<16x16xf32>
      %28 = arith.mulf %26, %27 : vector<16x16xf32>
      %c0_12 = arith.constant 0 : index
      %c0_13 = arith.constant 0 : index
      %29 = vector.load %arg2[%c0_12, %c0_13] : memref<16x16xf32, #tpu.memory_space<vmem>>, vector<16x16xf32>
      %30 = arith.addf %28, %29 : vector<16x16xf32>
      %cst_14 = arith.constant dense<0xFF800000> : vector<16xf32>
      %31 = vector.multi_reduction <maximumf>, %30, %cst_14 [1] : vector<16x16xf32> to vector<16xf32>
      %32 = vector.shape_cast %31 : vector<16xf32> to vector<16x1xf32>
      %33 = vector.broadcast %32 : vector<16x1xf32> to vector<16x16xf32>
      %34 = arith.subf %30, %33 : vector<16x16xf32>
      %35 = math.exp %34 : vector<16x16xf32>
      %cst_15 = arith.constant dense<0.000000e+00> : vector<16xf32>
      %36 = vector.multi_reduction <add>, %35, %cst_15 [1] : vector<16x16xf32> to vector<16xf32>
      %37 = vector.shape_cast %36 : vector<16xf32> to vector<16x1xf32>
      %38 = math.log %37 : vector<16x1xf32>
      %39 = arith.addf %32, %38 : vector<16x1xf32>
      %c0_16 = arith.constant 0 : index
      %c0_17 = arith.constant 0 : index
      %40 = vector.load %arg3[%c0_16, %c0_17] : memref<16x16xf32, #tpu.memory_space<vmem>>, vector<16x16xf32>
      %41 = arith.mulf %28, %40 : vector<16x16xf32>
      %cst_18 = arith.constant dense<0.000000e+00> : vector<16xf32>
      %42 = vector.multi_reduction <add>, %41, %cst_18 [1] : vector<16x16xf32> to vector<16xf32>
      %43 = vector.shape_cast %42 : vector<16xf32> to vector<16x1xf32>
      %44 = arith.subf %39, %43 : vector<16x1xf32>
      %cst_19 = arith.constant 0.000000e+00 : f32
      %45 = vector.broadcast %cst_19 : f32 to vector<16x1xf32>
      %46 = arith.select %21, %44, %45 : vector<16x1xi1>, vector<16x1xf32>
      %47 = vector.shape_cast %46 : vector<16x1xf32> to vector<1x16x1xf32>
      %cst_20 = arith.constant dense<0.000000e+00> : vector<1xf32>
      %48 = vector.multi_reduction <add>, %47, %cst_20 [1, 2] : vector<1x16x1xf32> to vector<1xf32>
      %49 = vector.shape_cast %48 : vector<1xf32> to vector<1x1x1xf32>
      %50 = vector.extract %49[0, 0, 0] : f32 from vector<1x1x1xf32>
      %51 = vector.broadcast %50 : f32 to vector<1x1xf32>
      %52 = arith.addf %arg6, %51 : vector<1x1xf32>
      scf.yield %52 : vector<1x1xf32>
    }
    %8 = vector.shape_cast %7 : vector<1x1xf32> to vector<1x1x1xf32>
    %9 = vector.broadcast %8 : vector<1x1x1xf32> to vector<1x8x128xf32>
    %c0 = arith.constant 0 : index
    %c0_3 = arith.constant 0 : index
    %c0_4 = arith.constant 0 : index
    %10 = vector.load %arg4[%c0, %c0_3, %c0_4] : memref<1x8x128xf32, #tpu.memory_space<vmem>>, vector<1x8x128xf32>
    tpu.vector_store %arg4[%c0, %c0_3, %c0_4], %9 {strides = array<i32>} : memref<1x8x128xf32, #tpu.memory_space<vmem>>, vector<1x8x128xf32>,
    return
  }
  func.func @transform_0(%arg0: i32) -> (i32, i32) {
    %c0_i32 = arith.constant 0 : i32
    %c0_i32_0 = arith.constant 0 : i32
    return %arg0, %c0_i32 : i32, i32
  }
  func.func @transform_1(%arg0: i32) -> (i32, i32) {
    %c0_i32 = arith.constant 0 : i32
    %c0_i32_0 = arith.constant 0 : i32
    %c0_i32_1 = arith.constant 0 : i32
    return %c0_i32, %c0_i32_0 : i32, i32
  }
  func.func @transform_2(%arg0: i32) -> (i32, i32) {
    %c0_i32 = arith.constant 0 : i32
    %c0_i32_0 = arith.constant 0 : i32
    %c0_i32_1 = arith.constant 0 : i32
    return %c0_i32, %c0_i32_0 : i32, i32
  }
  func.func @transform_3(%arg0: i32) -> (i32, i32, i32) {
    %c0_i32 = arith.constant 0 : i32
    %c0_i32_0 = arith.constant 0 : i32
    %c0_i32_1 = arith.constant 0 : i32
    return %arg0, %c0_i32, %c0_i32_0 : i32, i32, i32
  }
}

</mosaic_0001>

<llo_original>
// kernel: tpu_custom_call.1
$region0: #{tpu_custom_call.1}
  #allocation0 [shape = 'u32[]', space=smem, size = 0x4, offset = 0x4, fixed_abs, tag = 'smem constant byte address 0x4 - core index']
  #allocation1 [shape = 'u32[144,128]{1,0:T(1,128)}', space=vmem, size = 0x12000, scoped, tag = 'internal scratch']
  %s0 = inlined_call_operand.hbm [shape: f32[16,32], index: 0, kind: input, shape index: {}]
  %s1 = inlined_call_operand.hbm [shape: f32[16,16], index: 1, kind: input, shape index: {}]
  %s2 = inlined_call_operand.hbm [shape: f32[16,16], index: 2, kind: input, shape index: {}]
  %s3 = inlined_call_operand.hbm [shape: f32[1,8,128], index: 3, kind: output, shape index: {}]
  %s4 = sld [smem:[#allocation0]]
  $region41: #{tpu_custom_call.1} parent=0
    _
  %s6 = ssub.s32 1, %s4
  %s7 = scalar_select 0, %s6, %s4
  $region1: #{tpu_custom_call.1} parent=0
    #allocation2 [shape = 'u8[8192]{0}', space=vmem, size = 0x2000, scoped, tag = 'input window, operand 0, single buffered']
    #allocation3 [shape = 's32[1]{0}', space=sflag, size = 0x4, scoped, tag = 'scoped memory for tpu_custom_call.1']
    #allocation4 [shape = 's32[1]{0}', space=sflag, size = 0x4, scoped, tag = 'scoped memory for tpu_custom_call.1']
    #allocation5 [shape = 'u8[8192]{0}', space=vmem, size = 0x2000, scoped, tag = 'input window, operand 1, single buffered']
    #allocation6 [shape = 's32[1]{0}', space=sflag, size = 0x4, scoped, tag = 'scoped memory for tpu_custom_call.1']
    #allocation7 [shape = 'u8[8192]{0}', space=vmem, size = 0x2000, scoped, tag = 'input window, operand 2, single buffered']
    #allocation8 [shape = 'u8[4096]{0}', space=vmem, size = 0x1000, scoped, tag = 'output window, operand 0, single buffered']
    %8 = vsyncpa [#allocation3], 0
    %9 = vsyncpa [#allocation6], 0
    %10 = vsyncpa [#allocation4], 0
    // Predicated region
    $region2: #{tpu_custom_call.1} parent=1 // pred_check
      _
    $region3: #{tpu_custom_call.1} parent=1 // pred_check_branch
      %12 = sbr.rel (0) target = $region5
    $region4: #{tpu_custom_call.1} parent=1 // pred_region
      %s14 = ssub.s32 256, 256
      %15 = vsyncadd [#allocation3], %s14
      %s16 = sshll.u32 [#allocation2], 4
      %s17 = int_to_ptr.vmem [resolvable:$true] %s16
      %22 = dma.hbm_to_vmem [thread:$0]  %s0, 256, %s17, [#allocation3], 128, 128, 8
    $region5: #{tpu_custom_call.1} parent=1 // pred_fallthru
      _
    // Predicated region
    $region6: #{tpu_custom_call.1} parent=1 // pred_check
      _
    $region7: #{tpu_custom_call.1} parent=1 // pred_check_branch
      %24 = sbr.rel (0) target = $region9
    $region8: #{tpu_custom_call.1} parent=1 // pred_region
      %s26 = ssub.s32 256, 256
      %27 = vsyncadd [#allocation6], %s26
      %s28 = sshll.u32 [#allocation5], 4
      %s29 = int_to_ptr.vmem [resolvable:$true] %s28
      %34 = dma.hbm_to_vmem [thread:$0]  %s1, 256, %s29, [#allocation6], 128, 128, 8
    $region9: #{tpu_custom_call.1} parent=1 // pred_fallthru
      _
    // Predicated region
    $region10: #{tpu_custom_call.1} parent=1 // pred_check
      _
    $region11: #{tpu_custom_call.1} parent=1 // pred_check_branch
      %36 = sbr.rel (0) target = $region13
    $region12: #{tpu_custom_call.1} parent=1 // pred_region
      %s38 = ssub.s32 256, 256
      %39 = vsyncadd [#allocation6], %s38
      %s40 = sshll.u32 [#allocation7], 4
      %s41 = int_to_ptr.vmem [resolvable:$true] %s40
      %46 = dma.hbm_to_vmem [thread:$0]  %s2, 256, %s41, [#allocation6], 128, 128, 8
    $region13: #{tpu_custom_call.1} parent=1 // pred_fallthru
      _
    // Predicated region
    $region14: #{tpu_custom_call.1} parent=1 // pred_check
      _
    $region15: #{tpu_custom_call.1} parent=1 // pred_check_branch
      %48 = sbr.rel (0) target = $region17
    $region16: #{tpu_custom_call.1} parent=1 // pred_region
      %49 = dma.done [#allocation3], 256
    $region17: #{tpu_custom_call.1} parent=1 // pred_fallthru
      _
    // Predicated region
    $region18: #{tpu_custom_call.1} parent=1 // pred_check
      _
    $region19: #{tpu_custom_call.1} parent=1 // pred_check_branch
      %51 = sbr.rel (0) target = $region21
    $region20: #{tpu_custom_call.1} parent=1 // pred_region
      %52 = dma.done [#allocation6], 256
    $region21: #{tpu_custom_call.1} parent=1 // pred_fallthru
      _
    // Predicated region
    $region22: #{tpu_custom_call.1} parent=1 // pred_check
      _
    $region23: #{tpu_custom_call.1} parent=1 // pred_check_branch
      %54 = sbr.rel (0) target = $region25
    $region24: #{tpu_custom_call.1} parent=1 // pred_region
      %55 = dma.done [#allocation6], 256
    $region25: #{tpu_custom_call.1} parent=1 // pred_fallthru
      _
    %s56 = smul.u32 0, 16
    %s57 = ssub.s32 1, 0
    %p58 = scmp.lt.s32.totalorder %s57, 1
    %s59 = scalar_select %p58, %s57, 1
    // While loop
    $region26: #{tpu_custom_call.1} parent=1 // loop_pre_header
      _
    $region27: #{tpu_custom_call.1} parent=1 // loop_header
      %s61 = sphi 0, %s63
      %p62 = scmp.ge.s32.totalorder %s61, %s59
      %v66 = vphi 0.0, %v227
    $region28: #{tpu_custom_call.1} parent=1 // loop_header_branch
      %65 = sbr.rel (%p62) target = $region32
    $region29: #{tpu_custom_call.1} parent=1 // loop_body
      %s67 = smul.u32 %s61, 16
      %s68 = scalar_lea.vmem [#allocation2], %s67
      %v69 = vld [vmem:[%s68] sm:$0xff]
      %v70 = vld [vmem:[%s68 + $0x8] sm:$0xff]
      %s71 = sadd.s32 %s56, %s67
      %v72 = vlaneseq
      %v73 = vshrl.u32 %v72, 7
      %v74 = vadd.s32 %v73, 8
      %v75 = vstv %s71
      %v76 = vadd.s32 %v75, %v73
      %v77 = vadd.s32 %v75, %v74
      %vm78 = vcmp.lt.s32.totalorder %v76, 16
      %vm79 = vcmp.lt.s32.totalorder %v77, 16
      %v80 = vsel %vm78, 1, 0
      %v81 = vsel %vm79, 1, 0
      %vm82 = vcmp.eq.s32.totalorder %v80, 1
      %vm83 = vcmp.eq.s32.totalorder %v81, 1
      %v84 = vsel %vm82, %v69, 0.0
      %v85 = vsel %vm83, %v70, 0.0
      %vm86 = vcmask 261120
      %v88 = vsel %vm86, %v84, 0
      %v91 = vsel %vm86, %v85, 0
      %93 = vmatprep.subr.mxu0 0.0
      %94 = vmatpush1.xpose.msra.mxu0 0.0
      %95 = vmatprep.subr.mxu0 0.0
      %96 = vmatpush1.xpose.msra.mxu0 0.0
      %97 = vmatprep.subr.mxu0 0.0
      %98 = vmatpush1.xpose.msra.mxu0 0.0
      %99 = vmatprep.subr.mxu0 0.0
      %100 = vmatpush1.xpose.msra.mxu0 0.0
      %101 = vmatprep.subr.mxu0 0.0
      %102 = vmatpush1.xpose.msra.mxu0 0.0
      %103 = vmatprep.subr.mxu0 0.0
      %104 = vmatpush1.xpose.msra.mxu0 0.0
      %105 = vmatprep.subr.mxu0 0.0
      %106 = vmatpush1.xpose.msra.mxu0 0.0
      %107 = vmatprep.subr.mxu0 0.0
      %108 = vmatpush1.xpose.msra.mxu0 0.0
      %109 = vmatprep.subr.mxu0 0.0
      %110 = vmatpush1.xpose.msra.mxu0 0.0
      %111 = vmatprep.subr.mxu0 0.0
      %112 = vmatpush1.xpose.msra.mxu0 0.0
      %113 = vmatprep.subr.mxu0 0.0
      %114 = vmatpush1.xpose.msra.mxu0 0.0
      %115 = vmatprep.subr.mxu0 0.0
      %116 = vmatpush1.xpose.msra.mxu0 0.0
      %117 = vmatprep.subr.mxu0 0.0
      %118 = vmatpush1.xpose.msra.mxu0 0.0
      %119 = vmatprep.subr.mxu0 0.0
      %120 = vmatpush1.xpose.msra.mxu0 0.0
      %121 = vmatprep.subr.mxu0 0.0
      %122 = vmatpush1.xpose.msra.mxu0 %v91
      %123 = vmatprep.subr.mxu0 0.0
      %124 = vmatpush1.xpose.msra.mxu0 %v88
      %125 = vmatprep.subr.mxu0 0.0
      %126 = vmatpush2.xpose.msra.mxu0 0.0
      %127 = vmatprep.subr.mxu0 0.0
      %128 = vmatpush2.xpose.msra.mxu0 0.0
      %129 = vmatprep.subr.mxu0 0.0
      %130 = vmatpush2.xpose.msra.mxu0 0.0
      %131 = vmatprep.subr.mxu0 0.0
      %132 = vmatpush2.xpose.msra.mxu0 0.0
      %133 = vmatprep.subr.mxu0 0.0
      %134 = vmatpush2.xpose.msra.mxu0 0.0
      %135 = vmatprep.subr.mxu0 0.0
      %136 = vmatpush2.xpose.msra.mxu0 0.0
      %137 = vmatprep.subr.mxu0 0.0
      %138 = vmatpush2.xpose.msra.mxu0 0.0
      %139 = vmatprep.subr.mxu0 0.0
      %140 = vmatpush2.xpose.msra.mxu0 0.0
      %141 = vmatprep.subr.mxu0 0.0
      %142 = vmatpush2.xpose.msra.mxu0 0.0
      %143 = vmatprep.subr.mxu0 0.0
      %144 = vmatpush2.xpose.msra.mxu0 0.0
      %145 = vmatprep.subr.mxu0 0.0
      %146 = vmatpush2.xpose.msra.mxu0 0.0
      %147 = vmatprep.subr.mxu0 0.0
      %148 = vmatpush2.xpose.msra.mxu0 0.0
      %149 = vmatprep.subr.mxu0 0.0
      %150 = vmatpush2.xpose.msra.mxu0 0.0
      %151 = vmatprep.subr.mxu0 0.0
      %152 = vmatpush2.xpose.msra.mxu0 0.0
      %153 = vmatprep.subr.mxu0 0.0
      %154 = vmatpush2.xpose.msra.mxu0 0.0
      %155 = vmatprep.subr.mxu0 0.0
      %156 = vmatpush2.xpose.msra.mxu0 0.0
      %157 = vmatprep.mubr.f32.mxu0 0.0
      %158 = vmatmul.mubr.f32.gmra.mxu0 %v88
      %v159 = vpop.f32.mrf.mxu0
      %v160 = vadd.f32 0.0, %v159
      %v161 = vpop.f32.mrf.mxu0
      %162 = vmatprep.mubr.f32.mxu0 0.0
      %163 = vmatmul.mubr.f32.gmra.mxu0 %v91
      %v164 = vpop.f32.mrf.mxu0
      %v165 = vadd.f32 0.0, %v164
      %v166 = vpop.f32.mrf.mxu0
      %167 = vdwg.mxu0
      %v168 = vmul.f32 %v160, 2.0
      %v169 = vmul.f32 %v165, 2.0
      %v170 = vld [vmem:[#allocation5] sm:$0xff]
      %v171 = vld [vmem:[#allocation5 + $0x8] sm:$0xff]
      %v172 = vadd.f32 %v168, %v170
      %v173 = vadd.f32 %v169, %v171
      %vm174 = vcmask 130048
      %v175 = vsel %vm174, %v172, -inf
      %176 = vmax.xlane.f32.xlu0 %v175
      %v177 = vpop.xlane.xlu0 %176
      %v178 = vsel %vm174, %v173, -inf
      %179 = vmax.xlane.f32.xlu0 %v178
      %v180 = vpop.xlane.xlu0 %179
      %v181 = vsub.f32 %v172, %v177
      %v182 = vsub.f32 %v173, %v180
      %v183 = vmul.f32 %v181, 1.442695
      %v184 = vpow.pop %v183
      %v185 = vmul.f32 %v182, 1.442695
      %v186 = vpow.pop %v185
      %v187 = vsel %vm174, %v184, 0.0
      %188 = vadd.xlane.f32.xlu0 %v187
      %v189 = vpop.xlane.xlu0 %188
      %v190 = vsel %vm174, %v186, 0.0
      %191 = vadd.xlane.f32.xlu0 %v190
      %v192 = vpop.xlane.xlu0 %191
      %v193 = vlog2.pop %v189
      %v194 = vmul.f32 %v193, 0.6931472
      %v195 = vlog2.pop %v192
      %v196 = vmul.f32 %v195, 0.6931472
      %v197 = vadd.f32 %v177, %v194
      %v198 = vadd.f32 %v180, %v196
      %v199 = vld [vmem:[#allocation7] sm:$0xff]
      %v200 = vld [vmem:[#allocation7 + $0x8] sm:$0xff]
      %v201 = vmul.f32 %v168, %v199
      %v202 = vmul.f32 %v169, %v200
      %v203 = vsel %vm174, %v201, 0.0
      %204 = vadd.xlane.f32.xlu0 %v203
      %v205 = vpop.xlane.xlu0 %204
      %v206 = vsel %vm174, %v202, 0.0
      %207 = vadd.xlane.f32.xlu0 %v206
      %v208 = vpop.xlane.xlu0 %207
      %v209 = vsub.f32 %v197, %v205
      %v210 = vsub.f32 %v198, %v208
      %v211 = vsel %vm78, %v209, 0.0
      %v212 = vsel %vm79, %v210, 0.0
      %vm213 = vcmask 7168
      %v214 = vsel %vm213, %v211, 0.0
      %v215 = vsel %vm213, %v212, 0.0
      %v216 = vadd.f32 %v214, %v215
      %217 = vadd.xlane.f32.xlu0 %v216
      %v218 = vpop.xlane.xlu0 %217
      %v219 = vrot.slane %v218, 4
      %v220 = vadd.f32 %v218, %v219
      %v221 = vrot.slane %v220, 2
      %v222 = vadd.f32 %v220, %v221
      %v223 = vrot.slane %v222, 1
      %v224 = vadd.f32 %v222, %v223
      %s225 = vtos %v224
      %v226 = vstv %s225
      %v227 = vadd.f32 %v66, %v226
    $region30: #{tpu_custom_call.1} parent=1 // loop_footer
      %s63 = sadd.s32 %s61, 1
    $region31: #{tpu_custom_call.1} parent=1 // loop_footer_branch
      %60 = sbr.rel target = $region27
    $region32: #{tpu_custom_call.1} parent=1 // loop_exit
      _
    %228 = vst [vmem:[#allocation8] sm:$0xff] %v66
    // Predicated region
    $region33: #{tpu_custom_call.1} parent=1 // pred_check
      _
    $region34: #{tpu_custom_call.1} parent=1 // pred_check_branch
      %230 = sbr.rel (0) target = $region36
    $region35: #{tpu_custom_call.1} parent=1 // pred_region
      %s232 = ssub.s32 128, 128
      %233 = vsyncadd [#allocation4], %s232
      %s235 = sshll.u32 [#allocation8], 4
      %s236 = int_to_ptr.vmem [resolvable:$true] %s235
      %238 = dma.vmem_to_hbm [thread:$0]  %s236, 128, %s3, [#allocation4]
    $region36: #{tpu_custom_call.1} parent=1 // pred_fallthru
      _
    // Predicated region
    $region37: #{tpu_custom_call.1} parent=1 // pred_check
      _
    $region38: #{tpu_custom_call.1} parent=1 // pred_check_branch
      %240 = sbr.rel (0) target = $region40
    $region39: #{tpu_custom_call.1} parent=1 // pred_region
      %241 = dma.done [#allocation4], 128
    $region40: #{tpu_custom_call.1} parent=1 // pred_fallthru
      _
    %242 = vsyncpa [#allocation3], 1
    %243 = vsyncpa [#allocation6], 1
    %244 = vsyncpa [#allocation4], 1

</llo_original>
